<compile_context>
chip_gen: v7x
topology: tpu7x:2x2x1
jax: 0.10.0
libtpu: 0.0.40
codegen_flags: <defaults>
</compile_context>

<pallas_src>
import functools

import jax
import jax.numpy as jnp
from jax.experimental import pallas as pl
from jax.experimental.pallas import tpu as pltpu


def _round_up(n, m):
    return ((n + m - 1) // m) * m


def _device_kind():
    try:
        return jax.devices()[0].device_kind.lower()
    except Exception:
        return ""


def _vmem_capacity_bytes():
    try:
        return int(pltpu.get_tpu_info().vmem_capacity_bytes)
    except Exception:
        return 64 * 1024 * 1024  # conservative: v7x has 64 MiB per TensorCore


# ----------------------------- kernels -----------------------------

def mlp_kernel_resident(x_ref, w1_ref, b1_ref, w2_ref, b2_ref, w3_ref, b3_ref, o_ref):
    # All three matmuls + bias + ReLU fused; weights stay VMEM-resident across the grid.
    x = x_ref[...]
    h = jnp.dot(x, w1_ref[...], preferred_element_type=jnp.float32) + b1_ref[...]
    h = jnp.maximum(h, 0.0).astype(w2_ref.dtype)
    h = jnp.dot(h, w2_ref[...], preferred_element_type=jnp.float32) + b2_ref[...]
    h = jnp.maximum(h, 0.0).astype(w3_ref.dtype)
    out = jnp.dot(h, w3_ref[...], preferred_element_type=jnp.float32) + b3_ref[...]
    o_ref[...] = out.astype(o_ref.dtype)


def mlp_kernel_streamed(x_ref, w1_ref, b1_ref, w2_ref, b2_ref, w3_ref, b3_ref, o_ref,
                        acc_ref):
    # Grid = (batch tiles, hidden chunks). Per k-chunk: compute the k-th slab of
    # h1 = relu(x@w1+b1) (w1 columns streamed), accumulate its contribution to layer 2
    # (w2 rows streamed) into an f32 VMEM accumulator; finalize layer 3 at the last k.
    k = pl.program_id(1)

    @pl.when(k == 0)
    def _():
        acc_ref[...] = jnp.zeros_like(acc_ref)

    h1 = jnp.dot(x_ref[...], w1_ref[...], preferred_element_type=jnp.float32) + b1_ref[...]
    h1 = jnp.maximum(h1, 0.0).astype(w2_ref.dtype)
    acc_ref[...] += jnp.dot(h1, w2_ref[...], preferred_element_type=jnp.float32)

    @pl.when(k == pl.num_programs(1) - 1)
    def _():
        h2 = jnp.maximum(acc_ref[...] + b2_ref[...], 0.0).astype(w3_ref.dtype)
        out = jnp.dot(h2, w3_ref[...], preferred_element_type=jnp.float32) + b3_ref[...]
        o_ref[...] = out.astype(o_ref.dtype)


# ----------------------------- wrappers -----------------------------

def prepare_params(w1, b1, w2, b2, w3, b3, compute_dtype=jnp.bfloat16):
    """One-time pad (features -> multiples of 128 for lane-dense loads/stores) + cast.

    Zero-padded weight rows/cols + zero bias keep semantics exact: padded hidden lanes
    hold relu(0)=0 and the padded rows of the next weight contribute nothing.
    """
    in_dim, hid = w1.shape
    out_dim = w3.shape[1]
    in_p, hid_p, out_p = (_round_up(d, 128) for d in (in_dim, hid, out_dim))
    cdt = compute_dtype

    def padw(w, r, c):
        w = jnp.asarray(w, cdt)
        return jnp.pad(w, ((0, r - w.shape[0]), (0, c - w.shape[1])))

    def padb(b, c):
        b = jnp.asarray(b, jnp.float32).reshape(1, -1)
        return jnp.pad(b, ((0, 0), (0, c - b.shape[1])))

    return (padw(w1, in_p, hid_p), padb(b1, hid_p),
            padw(w2, hid_p, hid_p), padb(b2, hid_p),
            padw(w3, hid_p, out_p), padb(b3, out_p))


@functools.partial(
    jax.jit,
    static_argnames=("out_dim", "block_b", "block_k", "stream", "out_dtype",
                     "vmem_limit", "single_buffer_weights"))
def _mlp_forward_impl(x, w1p, b1p, w2p, b2p, w3p, b3p, *, out_dim, block_b, block_k,
                      stream, out_dtype, vmem_limit, single_buffer_weights):
    B, in_dim = x.shape
    in_p, hid_p = w1p.shape
    out_p = w3p.shape[1]
    cdt = w1p.dtype
    bb = block_b
    B_p = _round_up(B, bb)

    # jnp.pad with zero widths is elided by XLA -> aligned shapes pay nothing.
    xp = jnp.pad(x.astype(cdt), ((0, B_p - B), (0, in_p - in_dim)))

    cbytes = jnp.dtype(cdt).itemsize
    flops = 2 * B_p * (in_p * hid_p + hid_p * hid_p + hid_p * out_p)
    bytes_accessed = int(
        B_p * in_p * cbytes
        + (in_p * hid_p + hid_p * hid_p + hid_p * out_p) * cbytes
        + (2 * hid_p + out_p) * 4
        + B_p * out_p * jnp.dtype(out_dtype).itemsize)
    cost = pl.CostEstimate(flops=flops, transcendentals=0, bytes_accessed=bytes_accessed)

    def const_spec(shape):
        # Constant index_map -> block DMA'd once and revisited; single-buffer it.
        if single_buffer_weights:
            return pl.BlockSpec(shape, lambda *_: (0, 0), pipeline_mode=pl.Buffered(1))
        return pl.BlockSpec(shape, lambda *_: (0, 0))

    if not stream:
        grid = (B_p // bb,)
        out_padded = pl.pallas_call(
            mlp_kernel_resident,
            out_shape=jax.ShapeDtypeStruct((B_p, out_p), out_dtype),
            grid_spec=pltpu.PrefetchScalarGridSpec(
                num_scalar_prefetch=0,
                grid=grid,
                in_specs=[
                    pl.BlockSpec((bb, in_p), lambda i: (i, 0)),   # x: tiled over batch
                    const_spec((in_p, hid_p)),                    # w1
                    const_spec((1, hid_p)),                       # b1
                    const_spec((hid_p, hid_p)),                   # w2
                    const_spec((1, hid_p)),                       # b2
                    const_spec((hid_p, out_p)),                   # w3
                    const_spec((1, out_p)),                       # b3
                ],
                out_specs=pl.BlockSpec((bb, out_p), lambda i: (i, 0)),
            ),
            compiler_params=pltpu.CompilerParams(
                dimension_semantics=("parallel",),
                vmem_limit_bytes=vmem_limit),
            cost_estimate=cost,
        )(xp, w1p, b1p, w2p, b2p, w3p, b3p)
    else:
        tk = block_k
        grid = (B_p // bb, hid_p // tk)
        out_padded = pl.pallas_call(
            mlp_kernel_streamed,
            out_shape=jax.ShapeDtypeStruct((B_p, out_p), out_dtype),
            grid_spec=pltpu.PrefetchScalarGridSpec(
                num_scalar_prefetch=0,
                grid=grid,
                in_specs=[
                    pl.BlockSpec((bb, in_p), lambda i, k: (i, 0)),   # x (revisited over k)
                    pl.BlockSpec((in_p, tk), lambda i, k: (0, k)),   # w1 column chunk
                    pl.BlockSpec((1, tk), lambda i, k: (0, k)),      # b1 chunk
                    pl.BlockSpec((tk, hid_p), lambda i, k: (k, 0)),  # w2 row chunk
                    const_spec((1, hid_p)),                          # b2 (resident)
                    const_spec((hid_p, out_p)),                      # w3 (resident)
                    const_spec((1, out_p)),                          # b3 (resident)
                ],
                out_specs=pl.BlockSpec((bb, out_p), lambda i, k: (i, 0)),
                scratch_shapes=[pltpu.VMEM((bb, hid_p), jnp.float32)],
            ),
            compiler_params=pltpu.CompilerParams(
                dimension_semantics=("parallel", "arbitrary"),
                vmem_limit_bytes=vmem_limit),
            cost_estimate=cost,
        )(xp, w1p, b1p, w2p, b2p, w3p, b3p)

    if B_p == B and out_p == out_dim:
        return out_padded
    return out_padded[:B, :out_dim]


def mlp_forward(x, padded_params, out_dim, *, block_b=None, block_k=None, stream=None,
                out_dtype=jnp.float32):
    """Forward pass. `padded_params` from prepare_params. out_dtype=bf16 halves
    writeback bytes if the consumer accepts it (strongest win on v5e's single vst slot)."""
    w1p, b1p, w2p, b2p, w3p, b3p = padded_params
    B = x.shape[0]
    in_p, hid_p = w1p.shape
    out_p = w3p.shape[1]
    cbytes = jnp.dtype(w1p.dtype).itemsize
    obytes = jnp.dtype(out_dtype).itemsize

    kind = _device_kind()
    cap = _vmem_capacity_bytes()
    budget = int(0.80 * cap)  # leave headroom for compiler internal scratch

    resident_w_bytes = ((in_p * hid_p + hid_p * hid_p + hid_p * out_p) * cbytes
                        + (2 * hid_p + out_p) * 4)
    if stream is None:
        # Stream w1/w2 over the hidden dim whenever fully-resident weights would eat
        # too much VMEM (mandatory for production hidden sizes on v7x's 64 MiB/TC).
        stream = resident_w_bytes > int(0.40 * cap)

    # Batch tile: target the MXU width (256 rows on v6e/v7x, 128 on older gens),
    # clamp to the batch; on v7x keep >=2 grid steps so both TensorCores get work.
    if block_b is None:
        bb = 256 if ("v6" in kind or "v7" in kind) else 128
    else:
        bb = block_b
    nb_target = 2 if ("v7" in kind and B >= 16) else 1
    bb = max(8, min(_round_up(bb, 8), _round_up(-(-B // nb_target), 8)))

    # --- VMEM budget (static Python ints; weights counted 1x with Buffered(1)) ---
    def need_resident(bb_):
        io = 2 * bb_ * (in_p * cbytes + out_p * obytes)   # double-buffered x / out tiles
        inter = 3 * bb_ * hid_p * 4                       # f32 temporaries (not pipelined)
        return resident_w_bytes + io + inter

    if stream:
        tk = block_k if block_k is not None else 512
        tk = max(128, _round_up(min(tk, hid_p), 128))
        while hid_p % tk != 0:
            tk -= 128
    else:
        tk = hid_p  # unused placeholder

    def need_streamed(bb_, tk_):
        resident = hid_p * out_p * cbytes + (hid_p + out_p) * 4       # w3/b2/b3, 1 buffer
        streamed = 2 * ((in_p + hid_p) * tk_ * cbytes + tk_ * 4)      # w1/b1/w2 chunks, 2 bufs
        io = 2 * bb_ * (in_p * cbytes + out_p * obytes)
        acc = bb_ * hid_p * 4
        inter = 2 * bb_ * hid_p * 4
        return resident + streamed + io + acc + inter

    if stream:
        while need_streamed(bb, tk) > budget and (tk > 128 or bb > 8):
            if tk > 128:
                tk = max(128, tk - 128)
                while hid_p % tk != 0:
                    tk -= 128
            else:
                bb = max(8, _round_up(bb // 2, 8))
        vmem_need = need_streamed(bb, tk)
    else:
        while need_resident(bb) > budget and bb > 8:
            bb = max(8, _round_up(bb // 2, 8))
        vmem_need = need_resident(bb)

    vmem_limit = int(min(budget, max(vmem_need + (4 << 20), 16 << 20)))

    kwargs = dict(out_dim=int(out_dim), block_b=int(bb), block_k=int(tk),
                  stream=bool(stream), out_dtype=out_dtype, vmem_limit=vmem_limit)
    try:
        return _mlp_forward_impl(x, *padded_params, single_buffer_weights=True, **kwargs)
    except Exception:
        # Fallback if this JAX build rejects pl.Buffered(1) single-buffering of the
        # constant weight blocks (costs ~2x weight VMEM, otherwise identical).
        return _mlp_forward_impl(x, *padded_params, single_buffer_weights=False, **kwargs)


# ----------------------------- reference & init -----------------------------

def init_params(key, input_dim, hidden_dim, output_dim):
    """Deterministic init mimicking nn.Linear's uniform(-1/sqrt(fan_in), 1/sqrt(fan_in))."""
    ks = jax.random.split(key, 6)

    def lin(kw, kb, fan_in, fan_out):
        bound = 1.0 / jnp.sqrt(fan_in)
        w = jax.random.uniform(kw, (fan_in, fan_out), jnp.float32, -bound, bound)
        b = jax.random.uniform(kb, (1, fan_out), jnp.float32, -bound, bound)
        return w, b

    w1, b1 = lin(ks[0], ks[1], input_dim, hidden_dim)
    w2, b2 = lin(ks[2], ks[3], hidden_dim, hidden_dim)
    w3, b3 = lin(ks[4], ks[5], hidden_dim, output_dim)
    return w1, b1, w2, b2, w3, b3


def mlp_ref(x, w1, b1, w2, b2, w3, b3, compute_dtype=jnp.bfloat16):
    """Reference following the same bf16-inputs / f32-accumulate numerics as the kernel."""
    f32 = jnp.float32
    cdt = compute_dtype
    xc = x.astype(cdt).astype(f32)
    h = jnp.maximum(xc @ w1.astype(cdt).astype(f32) + b1, 0.0)
    h = h.astype(cdt).astype(f32)
    h = jnp.maximum(h @ w2.astype(cdt).astype(f32) + b2, 0.0)
    h = h.astype(cdt).astype(f32)
    return h @ w3.astype(cdt).astype(f32) + b3


if __name__ == "__main__":
    key = jax.random.PRNGKey(0)
    kx1, kp1, kx2, kp2 = jax.random.split(key, 4)

    # 1) Small shapes, VMEM-resident fast path (auto-selected).
    B, D_in, D_hid, D_out = 8, 16, 32, 4
    x = jax.random.normal(kx1, (B, D_in), jnp.float32)
    params = init_params(kp1, D_in, D_hid, D_out)
    padded = prepare_params(*params)
    out = jax.block_until_ready(mlp_forward(x, padded, out_dim=D_out))
    ref = mlp_ref(x, *params)
    assert out.shape == (B, D_out)
    assert jnp.allclose(out, ref, atol=2e-2, rtol=2e-2), "resident path mismatch vs reference"

    # 2) Force the K-streamed path (w1/b1/w2 streamed in 128-wide hidden chunks with an
    #    f32 accumulator) so the big-hidden code path is compiled and checked too.
    B2, D_in2, D_hid2, D_out2 = 16, 64, 512, 8
    x2 = jax.random.normal(kx2, (B2, D_in2), jnp.float32)
    params2 = init_params(kp2, D_in2, D_hid2, D_out2)
    padded2 = prepare_params(*params2)
    out2 = jax.block_until_ready(
        mlp_forward(x2, padded2, out_dim=D_out2, stream=True, block_k=128))
    ref2 = mlp_ref(x2, *params2)
    assert out2.shape == (B2, D_out2)
    assert jnp.allclose(out2, ref2, atol=2e-2, rtol=2e-2), "streamed path mismatch vs reference"

    print("KERNEL_OK")
</pallas_src>

<mosaic_0001>
module attributes {stable_mosaic.version = 11 : i64} {
  func.func @mlp_kernel_resident(%arg0: i32, %arg1: memref<8x128xbf16, #tpu.memory_space<vmem>>, %arg2: memref<128x128xbf16, #tpu.memory_space<vmem>>, %arg3: memref<1x128xf32, #tpu.memory_space<vmem>>, %arg4: memref<128x128xbf16, #tpu.memory_space<vmem>>, %arg5: memref<1x128xf32, #tpu.memory_space<vmem>>, %arg6: memref<128x128xbf16, #tpu.memory_space<vmem>>, %arg7: memref<1x128xf32, #tpu.memory_space<vmem>>, %arg8: memref<8x128xf32, #tpu.memory_space<vmem>>) attributes {dimension_semantics = [#tpu.dimension_semantics<parallel>], iteration_bounds = array<i64: 1>, scalar_prefetch = 0 : i64, scratch_operands = 0 : i64, tpu.core_type = #tpu.core_type<tc>, window_params = [{transform_indices = @transform_0, window_bounds = array<i64: 8, 128>}, {pipeline_mode = #tpu.pipeline_mode<synchronous>, transform_indices = @transform_1, window_bounds = array<i64: 128, 128>}, {pipeline_mode = #tpu.pipeline_mode<synchronous>, transform_indices = @transform_2, window_bounds = array<i64: 1, 128>}, {pipeline_mode = #tpu.pipeline_mode<synchronous>, transform_indices = @transform_3, window_bounds = array<i64: 128, 128>}, {pipeline_mode = #tpu.pipeline_mode<synchronous>, transform_indices = @transform_4, window_bounds = array<i64: 1, 128>}, {pipeline_mode = #tpu.pipeline_mode<synchronous>, transform_indices = @transform_5, window_bounds = array<i64: 128, 128>}, {pipeline_mode = #tpu.pipeline_mode<synchronous>, transform_indices = @transform_6, window_bounds = array<i64: 1, 128>}, {transform_indices = @transform_7, window_bounds = array<i64: 8, 128>}]} {
    %c0 = arith.constant 0 : index
    %c0_0 = arith.constant 0 : index
    %0 = vector.load %arg1[%c0, %c0_0] : memref<8x128xbf16, #tpu.memory_space<vmem>>, vector<8x128xbf16>
    %c0_1 = arith.constant 0 : index
    %c0_2 = arith.constant 0 : index
    %1 = vector.load %arg2[%c0_1, %c0_2] : memref<128x128xbf16, #tpu.memory_space<vmem>>, vector<128x128xbf16>
    %cst = arith.constant dense<0.000000e+00> : vector<8x128xf32>
    %2 = tpu.matmul %0, %1, %cst {dimension_numbers = #tpu.dot_dimension_numbers<[1], [0], [0], [1], [0, 0, 1, 1], [], []>} : vector<8x128xbf16>, vector<128x128xbf16>, vector<8x128xf32> -> vector<8x128xf32>
    %c0_3 = arith.constant 0 : index
    %c0_4 = arith.constant 0 : index
    %3 = vector.load %arg3[%c0_3, %c0_4] : memref<1x128xf32, #tpu.memory_space<vmem>>, vector<1x128xf32>
    %4 = vector.broadcast %3 : vector<1x128xf32> to vector<8x128xf32>
    %5 = arith.addf %2, %4 : vector<8x128xf32>
    %cst_5 = arith.constant 0.000000e+00 : f32
    %6 = vector.broadcast %cst_5 : f32 to vector<8x128xf32>
    %7 = arith.maximumf %5, %6 : vector<8x128xf32>
    %8 = arith.truncf %7 : vector<8x128xf32> to vector<8x128xbf16>
    %c0_6 = arith.constant 0 : index
    %c0_7 = arith.constant 0 : index
    %9 = vector.load %arg4[%c0_6, %c0_7] : memref<128x128xbf16, #tpu.memory_space<vmem>>, vector<128x128xbf16>
    %cst_8 = arith.constant dense<0.000000e+00> : vector<8x128xf32>
    %10 = tpu.matmul %8, %9, %cst_8 {dimension_numbers = #tpu.dot_dimension_numbers<[1], [0], [0], [1], [0, 0, 1, 1], [], []>} : vector<8x128xbf16>, vector<128x128xbf16>, vector<8x128xf32> -> vector<8x128xf32>
    %c0_9 = arith.constant 0 : index
    %c0_10 = arith.constant 0 : index
    %11 = vector.load %arg5[%c0_9, %c0_10] : memref<1x128xf32, #tpu.memory_space<vmem>>, vector<1x128xf32>
    %12 = vector.broadcast %11 : vector<1x128xf32> to vector<8x128xf32>
    %13 = arith.addf %10, %12 : vector<8x128xf32>
    %cst_11 = arith.constant 0.000000e+00 : f32
    %14 = vector.broadcast %cst_11 : f32 to vector<8x128xf32>
    %15 = arith.maximumf %13, %14 : vector<8x128xf32>
    %16 = arith.truncf %15 : vector<8x128xf32> to vector<8x128xbf16>
    %c0_12 = arith.constant 0 : index
    %c0_13 = arith.constant 0 : index
    %17 = vector.load %arg6[%c0_12, %c0_13] : memref<128x128xbf16, #tpu.memory_space<vmem>>, vector<128x128xbf16>
    %cst_14 = arith.constant dense<0.000000e+00> : vector<8x128xf32>
    %18 = tpu.matmul %16, %17, %cst_14 {dimension_numbers = #tpu.dot_dimension_numbers<[1], [0], [0], [1], [0, 0, 1, 1], [], []>} : vector<8x128xbf16>, vector<128x128xbf16>, vector<8x128xf32> -> vector<8x128xf32>
    %c0_15 = arith.constant 0 : index
    %c0_16 = arith.constant 0 : index
    %19 = vector.load %arg7[%c0_15, %c0_16] : memref<1x128xf32, #tpu.memory_space<vmem>>, vector<1x128xf32>
    %20 = vector.broadcast %19 : vector<1x128xf32> to vector<8x128xf32>
    %21 = arith.addf %18, %20 : vector<8x128xf32>
    %c0_17 = arith.constant 0 : index
    %c0_18 = arith.constant 0 : index
    %22 = vector.load %arg8[%c0_17, %c0_18] : memref<8x128xf32, #tpu.memory_space<vmem>>, vector<8x128xf32>
    tpu.vector_store %arg8[%c0_17, %c0_18], %21 {strides = array<i32>} : memref<8x128xf32, #tpu.memory_space<vmem>>, vector<8x128xf32>,
    return
  }
  func.func @transform_0(%arg0: i32) -> (i32, i32) {
    %c0_i32 = arith.constant 0 : i32
    %c0_i32_0 = arith.constant 0 : i32
    return %arg0, %c0_i32 : i32, i32
  }
  func.func @transform_1(%arg0: i32) -> (i32, i32) {
    %c0_i32 = arith.constant 0 : i32
    %c0_i32_0 = arith.constant 0 : i32
    %c0_i32_1 = arith.constant 0 : i32
    return %c0_i32, %c0_i32_0 : i32, i32
  }
  func.func @transform_2(%arg0: i32) -> (i32, i32) {
    %c0_i32 = arith.constant 0 : i32
    %c0_i32_0 = arith.constant 0 : i32
    %c0_i32_1 = arith.constant 0 : i32
    return %c0_i32, %c0_i32_0 : i32, i32
  }
  func.func @transform_3(%arg0: i32) -> (i32, i32) {
    %c0_i32 = arith.constant 0 : i32
    %c0_i32_0 = arith.constant 0 : i32
    %c0_i32_1 = arith.constant 0 : i32
    return %c0_i32, %c0_i32_0 : i32, i32
  }
  func.func @transform_4(%arg0: i32) -> (i32, i32) {
    %c0_i32 = arith.constant 0 : i32
    %c0_i32_0 = arith.constant 0 : i32
    %c0_i32_1 = arith.constant 0 : i32
    return %c0_i32, %c0_i32_0 : i32, i32
  }
  func.func @transform_5(%arg0: i32) -> (i32, i32) {
    %c0_i32 = arith.constant 0 : i32
    %c0_i32_0 = arith.constant 0 : i32
    %c0_i32_1 = arith.constant 0 : i32
    return %c0_i32, %c0_i32_0 : i32, i32
  }
  func.func @transform_6(%arg0: i32) -> (i32, i32) {
    %c0_i32 = arith.constant 0 : i32
    %c0_i32_0 = arith.constant 0 : i32
    %c0_i32_1 = arith.constant 0 : i32
    return %c0_i32, %c0_i32_0 : i32, i32
  }
  func.func @transform_7(%arg0: i32) -> (i32, i32) {
    %c0_i32 = arith.constant 0 : i32
    %c0_i32_0 = arith.constant 0 : i32
    return %arg0, %c0_i32 : i32, i32
  }
}

module attributes {stable_mosaic.version = 11 : i64} {
  func.func @mlp_kernel_resident(%arg0: i32, %arg1: memref<8x128xbf16, #tpu.memory_space<vmem>>, %arg2: memref<128x128xbf16, #tpu.memory_space<vmem>>, %arg3: memref<1x128xf32, #tpu.memory_space<vmem>>, %arg4: memref<128x128xbf16, #tpu.memory_space<vmem>>, %arg5: memref<1x128xf32, #tpu.memory_space<vmem>>, %arg6: memref<128x128xbf16, #tpu.memory_space<vmem>>, %arg7: memref<1x128xf32, #tpu.memory_space<vmem>>, %arg8: memref<8x128xf32, #tpu.memory_space<vmem>>) attributes {dimension_semantics = [#tpu.dimension_semantics<parallel>], iteration_bounds = array<i64: 1>, scalar_prefetch = 0 : i64, scratch_operands = 0 : i64, tpu.core_type = #tpu.core_type<tc>, window_params = [{transform_indices = @transform_0, window_bounds = array<i64: 8, 128>}, {pipeline_mode = #tpu.pipeline_mode<synchronous>, transform_indices = @transform_1, window_bounds = array<i64: 128, 128>}, {pipeline_mode = #tpu.pipeline_mode<synchronous>, transform_indices = @transform_2, window_bounds = array<i64: 1, 128>}, {pipeline_mode = #tpu.pipeline_mode<synchronous>, transform_indices = @transform_3, window_bounds = array<i64: 128, 128>}, {pipeline_mode = #tpu.pipeline_mode<synchronous>, transform_indices = @transform_4, window_bounds = array<i64: 1, 128>}, {pipeline_mode = #tpu.pipeline_mode<synchronous>, transform_indices = @transform_5, window_bounds = array<i64: 128, 128>}, {pipeline_mode = #tpu.pipeline_mode<synchronous>, transform_indices = @transform_6, window_bounds = array<i64: 1, 128>}, {transform_indices = @transform_7, window_bounds = array<i64: 8, 128>}]} {
    %c0 = arith.constant 0 : index
    %c0_0 = arith.constant 0 : index
    %0 = vector.load %arg1[%c0, %c0_0] : memref<8x128xbf16, #tpu.memory_space<vmem>>, vector<8x128xbf16>
    %c0_1 = arith.constant 0 : index
    %c0_2 = arith.constant 0 : index
    %1 = vector.load %arg2[%c0_1, %c0_2] : memref<128x128xbf16, #tpu.memory_space<vmem>>, vector<128x128xbf16>
    %cst = arith.constant dense<0.000000e+00> : vector<8x128xf32>
    %2 = tpu.matmul %0, %1, %cst {dimension_numbers = #tpu.dot_dimension_numbers<[1], [0], [0], [1], [0, 0, 1, 1], [], []>} : vector<8x128xbf16>, vector<128x128xbf16>, vector<8x128xf32> -> vector<8x128xf32>
    %c0_3 = arith.constant 0 : index
    %c0_4 = arith.constant 0 : index
    %3 = vector.load %arg3[%c0_3, %c0_4] : memref<1x128xf32, #tpu.memory_space<vmem>>, vector<1x128xf32>
    %4 = vector.broadcast %3 : vector<1x128xf32> to vector<8x128xf32>
    %5 = arith.addf %2, %4 : vector<8x128xf32>
    %cst_5 = arith.constant 0.000000e+00 : f32
    %6 = vector.broadcast %cst_5 : f32 to vector<8x128xf32>
    %7 = arith.maximumf %5, %6 : vector<8x128xf32>
    %8 = arith.truncf %7 : vector<8x128xf32> to vector<8x128xbf16>
    %c0_6 = arith.constant 0 : index
    %c0_7 = arith.constant 0 : index
    %9 = vector.load %arg4[%c0_6, %c0_7] : memref<128x128xbf16, #tpu.memory_space<vmem>>, vector<128x128xbf16>
    %cst_8 = arith.constant dense<0.000000e+00> : vector<8x128xf32>
    %10 = tpu.matmul %8, %9, %cst_8 {dimension_numbers = #tpu.dot_dimension_numbers<[1], [0], [0], [1], [0, 0, 1, 1], [], []>} : vector<8x128xbf16>, vector<128x128xbf16>, vector<8x128xf32> -> vector<8x128xf32>
    %c0_9 = arith.constant 0 : index
    %c0_10 = arith.constant 0 : index
    %11 = vector.load %arg5[%c0_9, %c0_10] : memref<1x128xf32, #tpu.memory_space<vmem>>, vector<1x128xf32>
    %12 = vector.broadcast %11 : vector<1x128xf32> to vector<8x128xf32>
    %13 = arith.addf %10, %12 : vector<8x128xf32>
    %cst_11 = arith.constant 0.000000e+00 : f32
    %14 = vector.broadcast %cst_11 : f32 to vector<8x128xf32>
    %15 = arith.maximumf %13, %14 : vector<8x128xf32>
    %16 = arith.truncf %15 : vector<8x128xf32> to vector<8x128xbf16>
    %c0_12 = arith.constant 0 : index
    %c0_13 = arith.constant 0 : index
    %17 = vector.load %arg6[%c0_12, %c0_13] : memref<128x128xbf16, #tpu.memory_space<vmem>>, vector<128x128xbf16>
    %cst_14 = arith.constant dense<0.000000e+00> : vector<8x128xf32>
    %18 = tpu.matmul %16, %17, %cst_14 {dimension_numbers = #tpu.dot_dimension_numbers<[1], [0], [0], [1], [0, 0, 1, 1], [], []>} : vector<8x128xbf16>, vector<128x128xbf16>, vector<8x128xf32> -> vector<8x128xf32>
    %c0_15 = arith.constant 0 : index
    %c0_16 = arith.constant 0 : index
    %19 = vector.load %arg7[%c0_15, %c0_16] : memref<1x128xf32, #tpu.memory_space<vmem>>, vector<1x128xf32>
    %20 = vector.broadcast %19 : vector<1x128xf32> to vector<8x128xf32>
    %21 = arith.addf %18, %20 : vector<8x128xf32>
    %c0_17 = arith.constant 0 : index
    %c0_18 = arith.constant 0 : index
    %22 = vector.load %arg8[%c0_17, %c0_18] : memref<8x128xf32, #tpu.memory_space<vmem>>, vector<8x128xf32>
    tpu.vector_store %arg8[%c0_17, %c0_18], %21 {strides = array<i32>} : memref<8x128xf32, #tpu.memory_space<vmem>>, vector<8x128xf32>,
    return
  }
  func.func @transform_0(%arg0: i32) -> (i32, i32) {
    %c0_i32 = arith.constant 0 : i32
    %c0_i32_0 = arith.constant 0 : i32
    return %arg0, %c0_i32 : i32, i32
  }
  func.func @transform_1(%arg0: i32) -> (i32, i32) {
    %c0_i32 = arith.constant 0 : i32
    %c0_i32_0 = arith.constant 0 : i32
    %c0_i32_1 = arith.constant 0 : i32
    return %c0_i32, %c0_i32_0 : i32, i32
  }
  func.func @transform_2(%arg0: i32) -> (i32, i32) {
    %c0_i32 = arith.constant 0 : i32
    %c0_i32_0 = arith.constant 0 : i32
    %c0_i32_1 = arith.constant 0 : i32
    return %c0_i32, %c0_i32_0 : i32, i32
  }
  func.func @transform_3(%arg0: i32) -> (i32, i32) {
    %c0_i32 = arith.constant 0 : i32
    %c0_i32_0 = arith.constant 0 : i32
    %c0_i32_1 = arith.constant 0 : i32
    return %c0_i32, %c0_i32_0 : i32, i32
  }
  func.func @transform_4(%arg0: i32) -> (i32, i32) {
    %c0_i32 = arith.constant 0 : i32
    %c0_i32_0 = arith.constant 0 : i32
    %c0_i32_1 = arith.constant 0 : i32
    return %c0_i32, %c0_i32_0 : i32, i32
  }
  func.func @transform_5(%arg0: i32) -> (i32, i32) {
    %c0_i32 = arith.constant 0 : i32
    %c0_i32_0 = arith.constant 0 : i32
    %c0_i32_1 = arith.constant 0 : i32
    return %c0_i32, %c0_i32_0 : i32, i32
  }
  func.func @transform_6(%arg0: i32) -> (i32, i32) {
    %c0_i32 = arith.constant 0 : i32
    %c0_i32_0 = arith.constant 0 : i32
    %c0_i32_1 = arith.constant 0 : i32
    return %c0_i32, %c0_i32_0 : i32, i32
  }
  func.func @transform_7(%arg0: i32) -> (i32, i32) {
    %c0_i32 = arith.constant 0 : i32
    %c0_i32_0 = arith.constant 0 : i32
    return %arg0, %c0_i32 : i32, i32
  }
}

</mosaic_0001>

<llo_original>
// kernel: _mlp_forward_impl.1
$region0: #{_mlp_forward_impl.1}
  #allocation0 [shape = 'u32[]', space=smem, size = 0x4, offset = 0x4, fixed_abs, tag = 'smem constant byte address 0x4 - core index']
  #allocation1 [shape = 'u32[144,128]{1,0:T(1,128)}', space=vmem, size = 0x12000, scoped, tag = 'internal scratch']
  %s0 = inlined_call_operand.vmem [shape: bf16[8,128], index: 0, kind: input, shape index: {}]
  %s1 = inlined_call_operand.hbm [shape: bf16[128,128], index: 1, kind: input, shape index: {}]
  %s2 = inlined_call_operand.vmem [shape: f32[1,128], index: 2, kind: input, shape index: {}]
  %s3 = inlined_call_operand.hbm [shape: bf16[128,128], index: 3, kind: input, shape index: {}]
  %s4 = inlined_call_operand.vmem [shape: f32[1,128], index: 4, kind: input, shape index: {}]
  %s5 = inlined_call_operand.hbm [shape: bf16[128,128], index: 5, kind: input, shape index: {}]
  %s6 = inlined_call_operand.vmem [shape: f32[1,128], index: 6, kind: input, shape index: {}]
  %s7 = inlined_call_operand.vmem [shape: f32[8,128], index: 7, kind: output, shape index: {}]
  %s8 = sld [smem:[#allocation0]]
  $region50: #{_mlp_forward_impl.1} parent=0
    _
  %s10 = ssub.s32 1, %s8
  %s11 = scalar_select 0, %s10, %s8
  $region1: #{_mlp_forward_impl.1} parent=0
    #allocation2 [shape = 'u8[32768]{0}', space=vmem, size = 0x8000, scoped, tag = 'input window, operand 1, single buffered']
    #allocation3 [shape = 's32[1]{0}', space=sflag, size = 0x4, scoped, tag = 'scoped memory for _mlp_forward_impl.1']
    #allocation4 [shape = 'u8[32768]{0}', space=vmem, size = 0x8000, scoped, tag = 'input window, operand 3, single buffered']
    #allocation5 [shape = 's32[1]{0}', space=sflag, size = 0x4, scoped, tag = 'scoped memory for _mlp_forward_impl.1']
    #allocation6 [shape = 'u8[32768]{0}', space=vmem, size = 0x8000, scoped, tag = 'input window, operand 5, single buffered']
    %12 = vsyncpa [#allocation3], 0
    %13 = vsyncpa [#allocation5], 0
    // Predicated region
    $region2: #{_mlp_forward_impl.1} parent=1 // pred_check
      _
    $region3: #{_mlp_forward_impl.1} parent=1 // pred_check_branch
      %15 = sbr.rel (0) target = $region5
    $region4: #{_mlp_forward_impl.1} parent=1 // pred_region
      _
    $region5: #{_mlp_forward_impl.1} parent=1 // pred_fallthru
      _
    // Predicated region
    $region6: #{_mlp_forward_impl.1} parent=1 // pred_check
      _
    $region7: #{_mlp_forward_impl.1} parent=1 // pred_check_branch
      %17 = sbr.rel (0) target = $region9
    $region8: #{_mlp_forward_impl.1} parent=1 // pred_region
      %s19 = ssub.s32 1024, 1024
      %20 = vsyncadd [#allocation3], %s19
      %s21 = sshll.u32 [#allocation2], 4
      %s22 = int_to_ptr.vmem [resolvable:$true] %s21
      %27 = dma.hbm_to_vmem [thread:$0]  %s1, 1024, %s22, [#allocation3], 64, 64, 4
    $region9: #{_mlp_forward_impl.1} parent=1 // pred_fallthru
      _
    // Predicated region
    $region10: #{_mlp_forward_impl.1} parent=1 // pred_check
      _
    $region11: #{_mlp_forward_impl.1} parent=1 // pred_check_branch
      %29 = sbr.rel (0) target = $region13
    $region12: #{_mlp_forward_impl.1} parent=1 // pred_region
      _
    $region13: #{_mlp_forward_impl.1} parent=1 // pred_fallthru
      _
    // Predicated region
    $region14: #{_mlp_forward_impl.1} parent=1 // pred_check
      _
    $region15: #{_mlp_forward_impl.1} parent=1 // pred_check_branch
      %31 = sbr.rel (0) target = $region17
    $region16: #{_mlp_forward_impl.1} parent=1 // pred_region
      %s33 = ssub.s32 1024, 1024
      %34 = vsyncadd [#allocation5], %s33
      %s35 = sshll.u32 [#allocation4], 4
      %s36 = int_to_ptr.vmem [resolvable:$true] %s35
      %41 = dma.hbm_to_vmem [thread:$0]  %s3, 1024, %s36, [#allocation5], 64, 64, 4
    $region17: #{_mlp_forward_impl.1} parent=1 // pred_fallthru
      _
    // Predicated region
    $region18: #{_mlp_forward_impl.1} parent=1 // pred_check
      _
    $region19: #{_mlp_forward_impl.1} parent=1 // pred_check_branch
      %43 = sbr.rel (0) target = $region21
    $region20: #{_mlp_forward_impl.1} parent=1 // pred_region
      _
    $region21: #{_mlp_forward_impl.1} parent=1 // pred_fallthru
      _
    // Predicated region
    $region22: #{_mlp_forward_impl.1} parent=1 // pred_check
      _
    $region23: #{_mlp_forward_impl.1} parent=1 // pred_check_branch
      %45 = sbr.rel (0) target = $region25
    $region24: #{_mlp_forward_impl.1} parent=1 // pred_region
      %s47 = ssub.s32 1024, 1024
      %48 = vsyncadd [#allocation5], %s47
      %s49 = sshll.u32 [#allocation6], 4
      %s50 = int_to_ptr.vmem [resolvable:$true] %s49
      %55 = dma.hbm_to_vmem [thread:$0]  %s5, 1024, %s50, [#allocation5], 64, 64, 4
    $region25: #{_mlp_forward_impl.1} parent=1 // pred_fallthru
      _
    // Predicated region
    $region26: #{_mlp_forward_impl.1} parent=1 // pred_check
      _
    $region27: #{_mlp_forward_impl.1} parent=1 // pred_check_branch
      %57 = sbr.rel (0) target = $region29
    $region28: #{_mlp_forward_impl.1} parent=1 // pred_region
      _
    $region29: #{_mlp_forward_impl.1} parent=1 // pred_fallthru
      _
    // Predicated region
    $region30: #{_mlp_forward_impl.1} parent=1 // pred_check
      _
    $region31: #{_mlp_forward_impl.1} parent=1 // pred_check_branch
      %59 = sbr.rel (0) target = $region33
    $region32: #{_mlp_forward_impl.1} parent=1 // pred_region
      %60 = dma.done [#allocation3], 1024
    $region33: #{_mlp_forward_impl.1} parent=1 // pred_fallthru
      _
    // Predicated region
    $region34: #{_mlp_forward_impl.1} parent=1 // pred_check
      _
    $region35: #{_mlp_forward_impl.1} parent=1 // pred_check_branch
      %62 = sbr.rel (0) target = $region37
    $region36: #{_mlp_forward_impl.1} parent=1 // pred_region
      %63 = dma.done [#allocation5], 1024
    $region37: #{_mlp_forward_impl.1} parent=1 // pred_fallthru
      _
    // Predicated region
    $region38: #{_mlp_forward_impl.1} parent=1 // pred_check
      _
    $region39: #{_mlp_forward_impl.1} parent=1 // pred_check_branch
      %65 = sbr.rel (0) target = $region41
    $region40: #{_mlp_forward_impl.1} parent=1 // pred_region
      %66 = dma.done [#allocation5], 1024
    $region41: #{_mlp_forward_impl.1} parent=1 // pred_fallthru
      _
    %v68 = vld [vmem:[%s0] sm:$0xf]
    %v69 = vld [vmem:[#allocation2] sm:$0xf]
    %v70 = vld [vmem:[#allocation2 + $0x4] sm:$0xf]
    %v71 = vld [vmem:[#allocation2 + $0x8] sm:$0xf]
    %v72 = vld [vmem:[#allocation2 + $0xc] sm:$0xf]
    %v73 = vld [vmem:[#allocation2 + $0x10] sm:$0xf]
    %v74 = vld [vmem:[#allocation2 + $0x14] sm:$0xf]
    %v75 = vld [vmem:[#allocation2 + $0x18] sm:$0xf]
    %v76 = vld [vmem:[#allocation2 + $0x1c] sm:$0xf]
    %v77 = vld [vmem:[#allocation2 + $0x20] sm:$0xf]
    %v78 = vld [vmem:[#allocation2 + $0x24] sm:$0xf]
    %v79 = vld [vmem:[#allocation2 + $0x28] sm:$0xf]
    %v80 = vld [vmem:[#allocation2 + $0x2c] sm:$0xf]
    %v81 = vld [vmem:[#allocation2 + $0x30] sm:$0xf]
    %v82 = vld [vmem:[#allocation2 + $0x34] sm:$0xf]
    %v83 = vld [vmem:[#allocation2 + $0x38] sm:$0xf]
    %v84 = vld [vmem:[#allocation2 + $0x3c] sm:$0xf]
    %v85 = vld [vmem:[%s2] sm:$0x1]
    %v87 = vlaneseq
    %v88 = vshrl.u32 %v87, 7
    %v89 = vsub.s32 0, %v88
    %v90 = vrot.slane %v85, %v89
    %v108 = vunpack.c.l.b16 %v69
    %v109 = vunpack.c.l.b16 %v70
    %v110 = vunpack.c.l.b16 %v71
    %v111 = vunpack.c.l.b16 %v72
    %v112 = vunpack.c.l.b16 %v73
    %v113 = vunpack.c.l.b16 %v74
    %v114 = vunpack.c.l.b16 %v75
    %v115 = vunpack.c.l.b16 %v76
    %v116 = vunpack.c.l.b16 %v77
    %v117 = vunpack.c.l.b16 %v78
    %v118 = vunpack.c.l.b16 %v79
    %v119 = vunpack.c.l.b16 %v80
    %v120 = vunpack.c.l.b16 %v81
    %v121 = vunpack.c.l.b16 %v82
    %v122 = vunpack.c.l.b16 %v83
    %v123 = vunpack.c.l.b16 %v84
    %v124 = vpack.c.b16 %v109, %v108
    %v125 = vpack.c.b16 %v111, %v110
    %v126 = vpack.c.b16 %v113, %v112
    %v127 = vpack.c.b16 %v115, %v114
    %v128 = vpack.c.b16 %v117, %v116
    %v129 = vpack.c.b16 %v119, %v118
    %v130 = vpack.c.b16 %v121, %v120
    %v131 = vpack.c.b16 %v123, %v122
    %140 = vmatprep.subr.bf16.mxu0 0
    %141 = vmatpush1.bf16.msra.mxu0 %v124
    %142 = vmatprep.subr.bf16.mxu0 0
    %143 = vmatpush1.bf16.msra.mxu0 %v125
    %144 = vmatprep.subr.bf16.mxu0 0
    %145 = vmatpush1.bf16.msra.mxu0 %v126
    %146 = vmatprep.subr.bf16.mxu0 0
    %147 = vmatpush1.bf16.msra.mxu0 %v127
    %148 = vmatprep.subr.bf16.mxu0 0
    %149 = vmatpush1.bf16.msra.mxu0 %v128
    %150 = vmatprep.subr.bf16.mxu0 0
    %151 = vmatpush1.bf16.msra.mxu0 %v129
    %152 = vmatprep.subr.bf16.mxu0 0
    %153 = vmatpush1.bf16.msra.mxu0 %v130
    %154 = vmatprep.subr.bf16.mxu0 0
    %155 = vmatpush1.bf16.msra.mxu0 %v131
    %156 = vmatprep.subr.bf16.mxu0 0
    %157 = vmatpush1.bf16.msra.mxu0 0
    %158 = vmatprep.subr.bf16.mxu0 0
    %159 = vmatpush1.bf16.msra.mxu0 0
    %160 = vmatprep.subr.bf16.mxu0 0
    %161 = vmatpush1.bf16.msra.mxu0 0
    %162 = vmatprep.subr.bf16.mxu0 0
    %163 = vmatpush1.bf16.msra.mxu0 0
    %164 = vmatprep.subr.bf16.mxu0 0
    %165 = vmatpush1.bf16.msra.mxu0 0
    %166 = vmatprep.subr.bf16.mxu0 0
    %167 = vmatpush1.bf16.msra.mxu0 0
    %168 = vmatprep.subr.bf16.mxu0 0
    %169 = vmatpush1.bf16.msra.mxu0 0
    %170 = vmatprep.subr.bf16.mxu0 0
    %171 = vmatpush1.bf16.msra.mxu0 0
    %172 = vmatprep.mubr.bf16.mxu0 0
    %173 = vmatmul.mubr.bf16.gmra.mrb[0].mxu0 %v68
    %v174 = vpop.f32.mrb[0].mxu0
    %v175 = vadd.f32 %v90, %v174
    %v176 = vpop.f32.mrb[0].mxu0
    %v177 = vpop.f32.mrb[0].mxu0
    %v178 = vpop.f32.mrb[0].mxu0
    %179 = vdwg.mxu0
    %v180 = vmax.f32 %v175, 0.0
    %v181 = vpack.c.bf16 %v180, %v180
    %v182 = vld [vmem:[#allocation4] sm:$0xf]
    %v183 = vld [vmem:[#allocation4 + $0x4] sm:$0xf]
    %v184 = vld [vmem:[#allocation4 + $0x8] sm:$0xf]
    %v185 = vld [vmem:[#allocation4 + $0xc] sm:$0xf]
    %v186 = vld [vmem:[#allocation4 + $0x10] sm:$0xf]
    %v187 = vld [vmem:[#allocation4 + $0x14] sm:$0xf]
    %v188 = vld [vmem:[#allocation4 + $0x18] sm:$0xf]
    %v189 = vld [vmem:[#allocation4 + $0x1c] sm:$0xf]
    %v190 = vld [vmem:[#allocation4 + $0x20] sm:$0xf]
    %v191 = vld [vmem:[#allocation4 + $0x24] sm:$0xf]
    %v192 = vld [vmem:[#allocation4 + $0x28] sm:$0xf]
    %v193 = vld [vmem:[#allocation4 + $0x2c] sm:$0xf]
    %v194 = vld [vmem:[#allocation4 + $0x30] sm:$0xf]
    %v195 = vld [vmem:[#allocation4 + $0x34] sm:$0xf]
    %v196 = vld [vmem:[#allocation4 + $0x38] sm:$0xf]
    %v197 = vld [vmem:[#allocation4 + $0x3c] sm:$0xf]
    %v198 = vld [vmem:[%s4] sm:$0x1]
    %v200 = vlaneseq
    %v201 = vshrl.u32 %v200, 7
    %v202 = vsub.s32 0, %v201
    %v203 = vrot.slane %v198, %v202
    %v221 = vunpack.c.l.b16 %v182
    %v222 = vunpack.c.l.b16 %v183
    %v223 = vunpack.c.l.b16 %v184
    %v224 = vunpack.c.l.b16 %v185
    %v225 = vunpack.c.l.b16 %v186
    %v226 = vunpack.c.l.b16 %v187
    %v227 = vunpack.c.l.b16 %v188
    %v228 = vunpack.c.l.b16 %v189
    %v229 = vunpack.c.l.b16 %v190
    %v230 = vunpack.c.l.b16 %v191
    %v231 = vunpack.c.l.b16 %v192
    %v232 = vunpack.c.l.b16 %v193
    %v233 = vunpack.c.l.b16 %v194
    %v234 = vunpack.c.l.b16 %v195
    %v235 = vunpack.c.l.b16 %v196
    %v236 = vunpack.c.l.b16 %v197
    %v237 = vpack.c.b16 %v222, %v221
    %v238 = vpack.c.b16 %v224, %v223
    %v239 = vpack.c.b16 %v226, %v225
    %v240 = vpack.c.b16 %v228, %v227
    %v241 = vpack.c.b16 %v230, %v229
    %v242 = vpack.c.b16 %v232, %v231
    %v243 = vpack.c.b16 %v234, %v233
    %v244 = vpack.c.b16 %v236, %v235
    %253 = vmatprep.subr.bf16.mxu0 0
    %254 = vmatpush1.bf16.msra.mxu0 %v237
    %255 = vmatprep.subr.bf16.mxu0 0
    %256 = vmatpush1.bf16.msra.mxu0 %v238
    %257 = vmatprep.subr.bf16.mxu0 0
    %258 = vmatpush1.bf16.msra.mxu0 %v239
    %259 = vmatprep.subr.bf16.mxu0 0
    %260 = vmatpush1.bf16.msra.mxu0 %v240
    %261 = vmatprep.subr.bf16.mxu0 0
    %262 = vmatpush1.bf16.msra.mxu0 %v241
    %263 = vmatprep.subr.bf16.mxu0 0
    %264 = vmatpush1.bf16.msra.mxu0 %v242
    %265 = vmatprep.subr.bf16.mxu0 0
    %266 = vmatpush1.bf16.msra.mxu0 %v243
    %267 = vmatprep.subr.bf16.mxu0 0
    %268 = vmatpush1.bf16.msra.mxu0 %v244
    %269 = vmatprep.subr.bf16.mxu0 0
    %270 = vmatpush1.bf16.msra.mxu0 0
    %271 = vmatprep.subr.bf16.mxu0 0
    %272 = vmatpush1.bf16.msra.mxu0 0
    %273 = vmatprep.subr.bf16.mxu0 0
    %274 = vmatpush1.bf16.msra.mxu0 0
    %275 = vmatprep.subr.bf16.mxu0 0
    %276 = vmatpush1.bf16.msra.mxu0 0
    %277 = vmatprep.subr.bf16.mxu0 0
    %278 = vmatpush1.bf16.msra.mxu0 0
    %279 = vmatprep.subr.bf16.mxu0 0
    %280 = vmatpush1.bf16.msra.mxu0 0
    %281 = vmatprep.subr.bf16.mxu0 0
    %282 = vmatpush1.bf16.msra.mxu0 0
    %283 = vmatprep.subr.bf16.mxu0 0
    %284 = vmatpush1.bf16.msra.mxu0 0
    %285 = vmatprep.mubr.bf16.mxu0 0
    %286 = vmatmul.mubr.bf16.gmra.mrb[0].mxu0 %v181
    %v287 = vpop.f32.mrb[0].mxu0
    %v288 = vadd.f32 %v203, %v287
    %v289 = vpop.f32.mrb[0].mxu0
    %v290 = vpop.f32.mrb[0].mxu0
    %v291 = vpop.f32.mrb[0].mxu0
    %292 = vdwg.mxu0
    %v293 = vmax.f32 %v288, 0.0
    %v294 = vpack.c.bf16 %v293, %v293
    %v295 = vld [vmem:[#allocation6] sm:$0xf]
    %v296 = vld [vmem:[#allocation6 + $0x4] sm:$0xf]
    %v297 = vld [vmem:[#allocation6 + $0x8] sm:$0xf]
    %v298 = vld [vmem:[#allocation6 + $0xc] sm:$0xf]
    %v299 = vld [vmem:[#allocation6 + $0x10] sm:$0xf]
    %v300 = vld [vmem:[#allocation6 + $0x14] sm:$0xf]
    %v301 = vld [vmem:[#allocation6 + $0x18] sm:$0xf]
    %v302 = vld [vmem:[#allocation6 + $0x1c] sm:$0xf]
    %v303 = vld [vmem:[#allocation6 + $0x20] sm:$0xf]
    %v304 = vld [vmem:[#allocation6 + $0x24] sm:$0xf]
    %v305 = vld [vmem:[#allocation6 + $0x28] sm:$0xf]
    %v306 = vld [vmem:[#allocation6 + $0x2c] sm:$0xf]
    %v307 = vld [vmem:[#allocation6 + $0x30] sm:$0xf]
    %v308 = vld [vmem:[#allocation6 + $0x34] sm:$0xf]
    %v309 = vld [vmem:[#allocation6 + $0x38] sm:$0xf]
    %v310 = vld [vmem:[#allocation6 + $0x3c] sm:$0xf]
    %v311 = vld [vmem:[%s6] sm:$0x1]
    %v313 = vlaneseq
    %v314 = vshrl.u32 %v313, 7
    %v315 = vsub.s32 0, %v314
    %v316 = vrot.slane %v311, %v315
    %v334 = vunpack.c.l.b16 %v295
    %v335 = vunpack.c.l.b16 %v296
    %v336 = vunpack.c.l.b16 %v297
    %v337 = vunpack.c.l.b16 %v298
    %v338 = vunpack.c.l.b16 %v299
    %v339 = vunpack.c.l.b16 %v300
    %v340 = vunpack.c.l.b16 %v301
    %v341 = vunpack.c.l.b16 %v302
    %v342 = vunpack.c.l.b16 %v303
    %v343 = vunpack.c.l.b16 %v304
    %v344 = vunpack.c.l.b16 %v305
    %v345 = vunpack.c.l.b16 %v306
    %v346 = vunpack.c.l.b16 %v307
    %v347 = vunpack.c.l.b16 %v308
    %v348 = vunpack.c.l.b16 %v309
    %v349 = vunpack.c.l.b16 %v310
    %v350 = vpack.c.b16 %v335, %v334
    %v351 = vpack.c.b16 %v337, %v336
    %v352 = vpack.c.b16 %v339, %v338
    %v353 = vpack.c.b16 %v341, %v340
    %v354 = vpack.c.b16 %v343, %v342
    %v355 = vpack.c.b16 %v345, %v344
    %v356 = vpack.c.b16 %v347, %v346
    %v357 = vpack.c.b16 %v349, %v348
    %366 = vmatprep.subr.bf16.mxu0 0
    %367 = vmatpush1.bf16.msra.mxu0 %v350
    %368 = vmatprep.subr.bf16.mxu0 0
    %369 = vmatpush1.bf16.msra.mxu0 %v351
    %370 = vmatprep.subr.bf16.mxu0 0
    %371 = vmatpush1.bf16.msra.mxu0 %v352
    %372 = vmatprep.subr.bf16.mxu0 0
    %373 = vmatpush1.bf16.msra.mxu0 %v353
    %374 = vmatprep.subr.bf16.mxu0 0
    %375 = vmatpush1.bf16.msra.mxu0 %v354
    %376 = vmatprep.subr.bf16.mxu0 0
    %377 = vmatpush1.bf16.msra.mxu0 %v355
    %378 = vmatprep.subr.bf16.mxu0 0
    %379 = vmatpush1.bf16.msra.mxu0 %v356
    %380 = vmatprep.subr.bf16.mxu0 0
    %381 = vmatpush1.bf16.msra.mxu0 %v357
    %382 = vmatprep.subr.bf16.mxu0 0
    %383 = vmatpush1.bf16.msra.mxu0 0
    %384 = vmatprep.subr.bf16.mxu0 0
    %385 = vmatpush1.bf16.msra.mxu0 0
    %386 = vmatprep.subr.bf16.mxu0 0
    %387 = vmatpush1.bf16.msra.mxu0 0
    %388 = vmatprep.subr.bf16.mxu0 0
    %389 = vmatpush1.bf16.msra.mxu0 0
    %390 = vmatprep.subr.bf16.mxu0 0
    %391 = vmatpush1.bf16.msra.mxu0 0
    %392 = vmatprep.subr.bf16.mxu0 0
    %393 = vmatpush1.bf16.msra.mxu0 0
    %394 = vmatprep.subr.bf16.mxu0 0
    %395 = vmatpush1.bf16.msra.mxu0 0
    %396 = vmatprep.subr.bf16.mxu0 0
    %397 = vmatpush1.bf16.msra.mxu0 0
    %398 = vmatprep.mubr.bf16.mxu0 0
    %399 = vmatmul.mubr.bf16.gmra.mrb[0].mxu0 %v294
    %v400 = vpop.f32.mrb[0].mxu0
    %v401 = vadd.f32 %v316, %v400
    %v402 = vpop.f32.mrb[0].mxu0
    %v403 = vpop.f32.mrb[0].mxu0
    %v404 = vpop.f32.mrb[0].mxu0
    %405 = vdwg.mxu0
    %406 = vst [vmem:[%s7] sm:$0xff] %v401
    // Predicated region
    $region42: #{_mlp_forward_impl.1} parent=1 // pred_check
      _
    $region43: #{_mlp_forward_impl.1} parent=1 // pred_check_branch
      %408 = sbr.rel (0) target = $region45
    $region44: #{_mlp_forward_impl.1} parent=1 // pred_region
      _
    $region45: #{_mlp_forward_impl.1} parent=1 // pred_fallthru
      _
    // Predicated region
    $region46: #{_mlp_forward_impl.1} parent=1 // pred_check
      _
    $region47: #{_mlp_forward_impl.1} parent=1 // pred_check_branch
      %410 = sbr.rel (0) target = $region49
    $region48: #{_mlp_forward_impl.1} parent=1 // pred_region
      _
    $region49: #{_mlp_forward_impl.1} parent=1 // pred_fallthru
      _
    %411 = vsyncpa [#allocation3], 1
    %412 = vsyncpa [#allocation5], 1

// kernel: _mlp_forward_impl.1
$region0: #{_mlp_forward_impl.1}
  #allocation0 [shape = 'u32[]', space=smem, size = 0x4, offset = 0x4, fixed_abs, tag = 'smem constant byte address 0x4 - core index']
  #allocation1 [shape = 'u32[144,128]{1,0:T(1,128)}', space=vmem, size = 0x12000, scoped, tag = 'internal scratch']
  %s0 = inlined_call_operand.vmem [shape: bf16[8,128], index: 0, kind: input, shape index: {}]
  %s1 = inlined_call_operand.hbm [shape: bf16[128,128], index: 1, kind: input, shape index: {}]
  %s2 = inlined_call_operand.vmem [shape: f32[1,128], index: 2, kind: input, shape index: {}]
  %s3 = inlined_call_operand.hbm [shape: bf16[128,128], index: 3, kind: input, shape index: {}]
  %s4 = inlined_call_operand.vmem [shape: f32[1,128], index: 4, kind: input, shape index: {}]
  %s5 = inlined_call_operand.hbm [shape: bf16[128,128], index: 5, kind: input, shape index: {}]
  %s6 = inlined_call_operand.vmem [shape: f32[1,128], index: 6, kind: input, shape index: {}]
  %s7 = inlined_call_operand.vmem [shape: f32[8,128], index: 7, kind: output, shape index: {}]
  %s8 = sld [smem:[#allocation0]]
  $region50: #{_mlp_forward_impl.1} parent=0
    _
  %s10 = ssub.s32 1, %s8
  %s11 = scalar_select 0, %s10, %s8
  $region1: #{_mlp_forward_impl.1} parent=0
    #allocation2 [shape = 'u8[32768]{0}', space=vmem, size = 0x8000, scoped, tag = 'input window, operand 1, single buffered']
    #allocation3 [shape = 's32[1]{0}', space=sflag, size = 0x4, scoped, tag = 'scoped memory for _mlp_forward_impl.1']
    #allocation4 [shape = 'u8[32768]{0}', space=vmem, size = 0x8000, scoped, tag = 'input window, operand 3, single buffered']
    #allocation5 [shape = 's32[1]{0}', space=sflag, size = 0x4, scoped, tag = 'scoped memory for _mlp_forward_impl.1']
    #allocation6 [shape = 'u8[32768]{0}', space=vmem, size = 0x8000, scoped, tag = 'input window, operand 5, single buffered']
    %12 = vsyncpa [#allocation3], 0
    %13 = vsyncpa [#allocation5], 0
    // Predicated region
    $region2: #{_mlp_forward_impl.1} parent=1 // pred_check
      _
    $region3: #{_mlp_forward_impl.1} parent=1 // pred_check_branch
      %15 = sbr.rel (0) target = $region5
    $region4: #{_mlp_forward_impl.1} parent=1 // pred_region
      _
    $region5: #{_mlp_forward_impl.1} parent=1 // pred_fallthru
      _
    // Predicated region
    $region6: #{_mlp_forward_impl.1} parent=1 // pred_check
      _
    $region7: #{_mlp_forward_impl.1} parent=1 // pred_check_branch
      %17 = sbr.rel (0) target = $region9
    $region8: #{_mlp_forward_impl.1} parent=1 // pred_region
      %s19 = ssub.s32 1024, 1024
      %20 = vsyncadd [#allocation3], %s19
      %s21 = sshll.u32 [#allocation2], 4
      %s22 = int_to_ptr.vmem [resolvable:$true] %s21
      %27 = dma.hbm_to_vmem [thread:$0]  %s1, 1024, %s22, [#allocation3], 64, 64, 4
    $region9: #{_mlp_forward_impl.1} parent=1 // pred_fallthru
      _
    // Predicated region
    $region10: #{_mlp_forward_impl.1} parent=1 // pred_check
      _
    $region11: #{_mlp_forward_impl.1} parent=1 // pred_check_branch
      %29 = sbr.rel (0) target = $region13
    $region12: #{_mlp_forward_impl.1} parent=1 // pred_region
      _
    $region13: #{_mlp_forward_impl.1} parent=1 // pred_fallthru
      _
    // Predicated region
    $region14: #{_mlp_forward_impl.1} parent=1 // pred_check
      _
    $region15: #{_mlp_forward_impl.1} parent=1 // pred_check_branch
      %31 = sbr.rel (0) target = $region17
    $region16: #{_mlp_forward_impl.1} parent=1 // pred_region
      %s33 = ssub.s32 1024, 1024
      %34 = vsyncadd [#allocation5], %s33
      %s35 = sshll.u32 [#allocation4], 4
      %s36 = int_to_ptr.vmem [resolvable:$true] %s35
      %41 = dma.hbm_to_vmem [thread:$0]  %s3, 1024, %s36, [#allocation5], 64, 64, 4
    $region17: #{_mlp_forward_impl.1} parent=1 // pred_fallthru
      _
    // Predicated region
    $region18: #{_mlp_forward_impl.1} parent=1 // pred_check
      _
    $region19: #{_mlp_forward_impl.1} parent=1 // pred_check_branch
      %43 = sbr.rel (0) target = $region21
    $region20: #{_mlp_forward_impl.1} parent=1 // pred_region
      _
    $region21: #{_mlp_forward_impl.1} parent=1 // pred_fallthru
      _
    // Predicated region
    $region22: #{_mlp_forward_impl.1} parent=1 // pred_check
      _
    $region23: #{_mlp_forward_impl.1} parent=1 // pred_check_branch
      %45 = sbr.rel (0) target = $region25
    $region24: #{_mlp_forward_impl.1} parent=1 // pred_region
      %s47 = ssub.s32 1024, 1024
      %48 = vsyncadd [#allocation5], %s47
      %s49 = sshll.u32 [#allocation6], 4
      %s50 = int_to_ptr.vmem [resolvable:$true] %s49
      %55 = dma.hbm_to_vmem [thread:$0]  %s5, 1024, %s50, [#allocation5], 64, 64, 4
    $region25: #{_mlp_forward_impl.1} parent=1 // pred_fallthru
      _
    // Predicated region
    $region26: #{_mlp_forward_impl.1} parent=1 // pred_check
      _
    $region27: #{_mlp_forward_impl.1} parent=1 // pred_check_branch
      %57 = sbr.rel (0) target = $region29
    $region28: #{_mlp_forward_impl.1} parent=1 // pred_region
      _
    $region29: #{_mlp_forward_impl.1} parent=1 // pred_fallthru
      _
    // Predicated region
    $region30: #{_mlp_forward_impl.1} parent=1 // pred_check
      _
    $region31: #{_mlp_forward_impl.1} parent=1 // pred_check_branch
      %59 = sbr.rel (0) target = $region33
    $region32: #{_mlp_forward_impl.1} parent=1 // pred_region
      %60 = dma.done [#allocation3], 1024
    $region33: #{_mlp_forward_impl.1} parent=1 // pred_fallthru
      _
    // Predicated region
    $region34: #{_mlp_forward_impl.1} parent=1 // pred_check
      _
    $region35: #{_mlp_forward_impl.1} parent=1 // pred_check_branch
      %62 = sbr.rel (0) target = $region37
    $region36: #{_mlp_forward_impl.1} parent=1 // pred_region
      %63 = dma.done [#allocation5], 1024
    $region37: #{_mlp_forward_impl.1} parent=1 // pred_fallthru
      _
    // Predicated region
    $region38: #{_mlp_forward_impl.1} parent=1 // pred_check
      _
    $region39: #{_mlp_forward_impl.1} parent=1 // pred_check_branch
      %65 = sbr.rel (0) target = $region41
    $region40: #{_mlp_forward_impl.1} parent=1 // pred_region
      %66 = dma.done [#allocation5], 1024
    $region41: #{_mlp_forward_impl.1} parent=1 // pred_fallthru
      _
    %v68 = vld [vmem:[%s0] sm:$0xf]
    %v69 = vld [vmem:[#allocation2] sm:$0xf]
    %v70 = vld [vmem:[#allocation2 + $0x4] sm:$0xf]
    %v71 = vld [vmem:[#allocation2 + $0x8] sm:$0xf]
    %v72 = vld [vmem:[#allocation2 + $0xc] sm:$0xf]
    %v73 = vld [vmem:[#allocation2 + $0x10] sm:$0xf]
    %v74 = vld [vmem:[#allocation2 + $0x14] sm:$0xf]
    %v75 = vld [vmem:[#allocation2 + $0x18] sm:$0xf]
    %v76 = vld [vmem:[#allocation2 + $0x1c] sm:$0xf]
    %v77 = vld [vmem:[#allocation2 + $0x20] sm:$0xf]
    %v78 = vld [vmem:[#allocation2 + $0x24] sm:$0xf]
    %v79 = vld [vmem:[#allocation2 + $0x28] sm:$0xf]
    %v80 = vld [vmem:[#allocation2 + $0x2c] sm:$0xf]
    %v81 = vld [vmem:[#allocation2 + $0x30] sm:$0xf]
    %v82 = vld [vmem:[#allocation2 + $0x34] sm:$0xf]
    %v83 = vld [vmem:[#allocation2 + $0x38] sm:$0xf]
    %v84 = vld [vmem:[#allocation2 + $0x3c] sm:$0xf]
    %v85 = vld [vmem:[%s2] sm:$0x1]
    %v87 = vlaneseq
    %v88 = vshrl.u32 %v87, 7
    %v89 = vsub.s32 0, %v88
    %v90 = vrot.slane %v85, %v89
    %v108 = vunpack.c.l.b16 %v69
    %v109 = vunpack.c.l.b16 %v70
    %v110 = vunpack.c.l.b16 %v71
    %v111 = vunpack.c.l.b16 %v72
    %v112 = vunpack.c.l.b16 %v73
    %v113 = vunpack.c.l.b16 %v74
    %v114 = vunpack.c.l.b16 %v75
    %v115 = vunpack.c.l.b16 %v76
    %v116 = vunpack.c.l.b16 %v77
    %v117 = vunpack.c.l.b16 %v78
    %v118 = vunpack.c.l.b16 %v79
    %v119 = vunpack.c.l.b16 %v80
    %v120 = vunpack.c.l.b16 %v81
    %v121 = vunpack.c.l.b16 %v82
    %v122 = vunpack.c.l.b16 %v83
    %v123 = vunpack.c.l.b16 %v84
    %v124 = vpack.c.b16 %v109, %v108
    %v125 = vpack.c.b16 %v111, %v110
    %v126 = vpack.c.b16 %v113, %v112
    %v127 = vpack.c.b16 %v115, %v114
    %v128 = vpack.c.b16 %v117, %v116
    %v129 = vpack.c.b16 %v119, %v118
    %v130 = vpack.c.b16 %v121, %v120
    %v131 = vpack.c.b16 %v123, %v122
    %140 = vmatprep.subr.bf16.mxu0 0
    %141 = vmatpush1.bf16.msra.mxu0 %v124
    %142 = vmatprep.subr.bf16.mxu0 0
    %143 = vmatpush1.bf16.msra.mxu0 %v125
    %144 = vmatprep.subr.bf16.mxu0 0
    %145 = vmatpush1.bf16.msra.mxu0 %v126
    %146 = vmatprep.subr.bf16.mxu0 0
    %147 = vmatpush1.bf16.msra.mxu0 %v127
    %148 = vmatprep.subr.bf16.mxu0 0
    %149 = vmatpush1.bf16.msra.mxu0 %v128
    %150 = vmatprep.subr.bf16.mxu0 0
    %151 = vmatpush1.bf16.msra.mxu0 %v129
    %152 = vmatprep.subr.bf16.mxu0 0
    %153 = vmatpush1.bf16.msra.mxu0 %v130
    %154 = vmatprep.subr.bf16.mxu0 0
    %155 = vmatpush1.bf16.msra.mxu0 %v131
    %156 = vmatprep.subr.bf16.mxu0 0
    %157 = vmatpush1.bf16.msra.mxu0 0
    %158 = vmatprep.subr.bf16.mxu0 0
    %159 = vmatpush1.bf16.msra.mxu0 0
    %160 = vmatprep.subr.bf16.mxu0 0
    %161 = vmatpush1.bf16.msra.mxu0 0
    %162 = vmatprep.subr.bf16.mxu0 0
    %163 = vmatpush1.bf16.msra.mxu0 0
    %164 = vmatprep.subr.bf16.mxu0 0
    %165 = vmatpush1.bf16.msra.mxu0 0
    %166 = vmatprep.subr.bf16.mxu0 0
    %167 = vmatpush1.bf16.msra.mxu0 0
    %168 = vmatprep.subr.bf16.mxu0 0
    %169 = vmatpush1.bf16.msra.mxu0 0
    %170 = vmatprep.subr.bf16.mxu0 0
    %171 = vmatpush1.bf16.msra.mxu0 0
    %172 = vmatprep.mubr.bf16.mxu0 0
    %173 = vmatmul.mubr.bf16.gmra.mrb[0].mxu0 %v68
    %v174 = vpop.f32.mrb[0].mxu0
    %v175 = vadd.f32 %v90, %v174
    %v176 = vpop.f32.mrb[0].mxu0
    %v177 = vpop.f32.mrb[0].mxu0
    %v178 = vpop.f32.mrb[0].mxu0
    %179 = vdwg.mxu0
    %v180 = vmax.f32 %v175, 0.0
    %v181 = vpack.c.bf16 %v180, %v180
    %v182 = vld [vmem:[#allocation4] sm:$0xf]
    %v183 = vld [vmem:[#allocation4 + $0x4] sm:$0xf]
    %v184 = vld [vmem:[#allocation4 + $0x8] sm:$0xf]
    %v185 = vld [vmem:[#allocation4 + $0xc] sm:$0xf]
    %v186 = vld [vmem:[#allocation4 + $0x10] sm:$0xf]
    %v187 = vld [vmem:[#allocation4 + $0x14] sm:$0xf]
    %v188 = vld [vmem:[#allocation4 + $0x18] sm:$0xf]
    %v189 = vld [vmem:[#allocation4 + $0x1c] sm:$0xf]
    %v190 = vld [vmem:[#allocation4 + $0x20] sm:$0xf]
    %v191 = vld [vmem:[#allocation4 + $0x24] sm:$0xf]
    %v192 = vld [vmem:[#allocation4 + $0x28] sm:$0xf]
    %v193 = vld [vmem:[#allocation4 + $0x2c] sm:$0xf]
    %v194 = vld [vmem:[#allocation4 + $0x30] sm:$0xf]
    %v195 = vld [vmem:[#allocation4 + $0x34] sm:$0xf]
    %v196 = vld [vmem:[#allocation4 + $0x38] sm:$0xf]
    %v197 = vld [vmem:[#allocation4 + $0x3c] sm:$0xf]
    %v198 = vld [vmem:[%s4] sm:$0x1]
    %v200 = vlaneseq
    %v201 = vshrl.u32 %v200, 7
    %v202 = vsub.s32 0, %v201
    %v203 = vrot.slane %v198, %v202
    %v221 = vunpack.c.l.b16 %v182
    %v222 = vunpack.c.l.b16 %v183
    %v223 = vunpack.c.l.b16 %v184
    %v224 = vunpack.c.l.b16 %v185
    %v225 = vunpack.c.l.b16 %v186
    %v226 = vunpack.c.l.b16 %v187
    %v227 = vunpack.c.l.b16 %v188
    %v228 = vunpack.c.l.b16 %v189
    %v229 = vunpack.c.l.b16 %v190
    %v230 = vunpack.c.l.b16 %v191
    %v231 = vunpack.c.l.b16 %v192
    %v232 = vunpack.c.l.b16 %v193
    %v233 = vunpack.c.l.b16 %v194
    %v234 = vunpack.c.l.b16 %v195
    %v235 = vunpack.c.l.b16 %v196
    %v236 = vunpack.c.l.b16 %v197
    %v237 = vpack.c.b16 %v222, %v221
    %v238 = vpack.c.b16 %v224, %v223
    %v239 = vpack.c.b16 %v226, %v225
    %v240 = vpack.c.b16 %v228, %v227
    %v241 = vpack.c.b16 %v230, %v229
    %v242 = vpack.c.b16 %v232, %v231
    %v243 = vpack.c.b16 %v234, %v233
    %v244 = vpack.c.b16 %v236, %v235
    %253 = vmatprep.subr.bf16.mxu0 0
    %254 = vmatpush1.bf16.msra.mxu0 %v237
    %255 = vmatprep.subr.bf16.mxu0 0
    %256 = vmatpush1.bf16.msra.mxu0 %v238
    %257 = vmatprep.subr.bf16.mxu0 0
    %258 = vmatpush1.bf16.msra.mxu0 %v239
    %259 = vmatprep.subr.bf16.mxu0 0
    %260 = vmatpush1.bf16.msra.mxu0 %v240
    %261 = vmatprep.subr.bf16.mxu0 0
    %262 = vmatpush1.bf16.msra.mxu0 %v241
    %263 = vmatprep.subr.bf16.mxu0 0
    %264 = vmatpush1.bf16.msra.mxu0 %v242
    %265 = vmatprep.subr.bf16.mxu0 0
    %266 = vmatpush1.bf16.msra.mxu0 %v243
    %267 = vmatprep.subr.bf16.mxu0 0
    %268 = vmatpush1.bf16.msra.mxu0 %v244
    %269 = vmatprep.subr.bf16.mxu0 0
    %270 = vmatpush1.bf16.msra.mxu0 0
    %271 = vmatprep.subr.bf16.mxu0 0
    %272 = vmatpush1.bf16.msra.mxu0 0
    %273 = vmatprep.subr.bf16.mxu0 0
    %274 = vmatpush1.bf16.msra.mxu0 0
    %275 = vmatprep.subr.bf16.mxu0 0
    %276 = vmatpush1.bf16.msra.mxu0 0
    %277 = vmatprep.subr.bf16.mxu0 0
    %278 = vmatpush1.bf16.msra.mxu0 0
    %279 = vmatprep.subr.bf16.mxu0 0
    %280 = vmatpush1.bf16.msra.mxu0 0
    %281 = vmatprep.subr.bf16.mxu0 0
    %282 = vmatpush1.bf16.msra.mxu0 0
    %283 = vmatprep.subr.bf16.mxu0 0
    %284 = vmatpush1.bf16.msra.mxu0 0
    %285 = vmatprep.mubr.bf16.mxu0 0
    %286 = vmatmul.mubr.bf16.gmra.mrb[0].mxu0 %v181
    %v287 = vpop.f32.mrb[0].mxu0
    %v288 = vadd.f32 %v203, %v287
    %v289 = vpop.f32.mrb[0].mxu0
    %v290 = vpop.f32.mrb[0].mxu0
    %v291 = vpop.f32.mrb[0].mxu0
    %292 = vdwg.mxu0
    %v293 = vmax.f32 %v288, 0.0
    %v294 = vpack.c.bf16 %v293, %v293
    %v295 = vld [vmem:[#allocation6] sm:$0xf]
    %v296 = vld [vmem:[#allocation6 + $0x4] sm:$0xf]
    %v297 = vld [vmem:[#allocation6 + $0x8] sm:$0xf]
    %v298 = vld [vmem:[#allocation6 + $0xc] sm:$0xf]
    %v299 = vld [vmem:[#allocation6 + $0x10] sm:$0xf]
    %v300 = vld [vmem:[#allocation6 + $0x14] sm:$0xf]
    %v301 = vld [vmem:[#allocation6 + $0x18] sm:$0xf]
    %v302 = vld [vmem:[#allocation6 + $0x1c] sm:$0xf]
    %v303 = vld [vmem:[#allocation6 + $0x20] sm:$0xf]
    %v304 = vld [vmem:[#allocation6 + $0x24] sm:$0xf]
    %v305 = vld [vmem:[#allocation6 + $0x28] sm:$0xf]
    %v306 = vld [vmem:[#allocation6 + $0x2c] sm:$0xf]
    %v307 = vld [vmem:[#allocation6 + $0x30] sm:$0xf]
    %v308 = vld [vmem:[#allocation6 + $0x34] sm:$0xf]
    %v309 = vld [vmem:[#allocation6 + $0x38] sm:$0xf]
    %v310 = vld [vmem:[#allocation6 + $0x3c] sm:$0xf]
    %v311 = vld [vmem:[%s6] sm:$0x1]
    %v313 = vlaneseq
    %v314 = vshrl.u32 %v313, 7
    %v315 = vsub.s32 0, %v314
    %v316 = vrot.slane %v311, %v315
    %v334 = vunpack.c.l.b16 %v295
    %v335 = vunpack.c.l.b16 %v296
    %v336 = vunpack.c.l.b16 %v297
    %v337 = vunpack.c.l.b16 %v298
    %v338 = vunpack.c.l.b16 %v299
    %v339 = vunpack.c.l.b16 %v300
    %v340 = vunpack.c.l.b16 %v301
    %v341 = vunpack.c.l.b16 %v302
    %v342 = vunpack.c.l.b16 %v303
    %v343 = vunpack.c.l.b16 %v304
    %v344 = vunpack.c.l.b16 %v305
    %v345 = vunpack.c.l.b16 %v306
    %v346 = vunpack.c.l.b16 %v307
    %v347 = vunpack.c.l.b16 %v308
    %v348 = vunpack.c.l.b16 %v309
    %v349 = vunpack.c.l.b16 %v310
    %v350 = vpack.c.b16 %v335, %v334
    %v351 = vpack.c.b16 %v337, %v336
    %v352 = vpack.c.b16 %v339, %v338
    %v353 = vpack.c.b16 %v341, %v340
    %v354 = vpack.c.b16 %v343, %v342
    %v355 = vpack.c.b16 %v345, %v344
    %v356 = vpack.c.b16 %v347, %v346
    %v357 = vpack.c.b16 %v349, %v348
    %366 = vmatprep.subr.bf16.mxu0 0
    %367 = vmatpush1.bf16.msra.mxu0 %v350
    %368 = vmatprep.subr.bf16.mxu0 0
    %369 = vmatpush1.bf16.msra.mxu0 %v351
    %370 = vmatprep.subr.bf16.mxu0 0
    %371 = vmatpush1.bf16.msra.mxu0 %v352
    %372 = vmatprep.subr.bf16.mxu0 0
    %373 = vmatpush1.bf16.msra.mxu0 %v353
    %374 = vmatprep.subr.bf16.mxu0 0
    %375 = vmatpush1.bf16.msra.mxu0 %v354
    %376 = vmatprep.subr.bf16.mxu0 0
    %377 = vmatpush1.bf16.msra.mxu0 %v355
    %378 = vmatprep.subr.bf16.mxu0 0
    %379 = vmatpush1.bf16.msra.mxu0 %v356
    %380 = vmatprep.subr.bf16.mxu0 0
    %381 = vmatpush1.bf16.msra.mxu0 %v357
    %382 = vmatprep.subr.bf16.mxu0 0
    %383 = vmatpush1.bf16.msra.mxu0 0
    %384 = vmatprep.subr.bf16.mxu0 0
    %385 = vmatpush1.bf16.msra.mxu0 0
    %386 = vmatprep.subr.bf16.mxu0 0
    %387 = vmatpush1.bf16.msra.mxu0 0
    %388 = vmatprep.subr.bf16.mxu0 0
    %389 = vmatpush1.bf16.msra.mxu0 0
    %390 = vmatprep.subr.bf16.mxu0 0
    %391 = vmatpush1.bf16.msra.mxu0 0
    %392 = vmatprep.subr.bf16.mxu0 0
    %393 = vmatpush1.bf16.msra.mxu0 0
    %394 = vmatprep.subr.bf16.mxu0 0
    %395 = vmatpush1.bf16.msra.mxu0 0
    %396 = vmatprep.subr.bf16.mxu0 0
    %397 = vmatpush1.bf16.msra.mxu0 0
    %398 = vmatprep.mubr.bf16.mxu0 0
    %399 = vmatmul.mubr.bf16.gmra.mrb[0].mxu0 %v294
    %v400 = vpop.f32.mrb[0].mxu0
    %v401 = vadd.f32 %v316, %v400
    %v402 = vpop.f32.mrb[0].mxu0
    %v403 = vpop.f32.mrb[0].mxu0
    %v404 = vpop.f32.mrb[0].mxu0
    %405 = vdwg.mxu0
    %406 = vst [vmem:[%s7] sm:$0xff] %v401
    // Predicated region
    $region42: #{_mlp_forward_impl.1} parent=1 // pred_check
      _
    $region43: #{_mlp_forward_impl.1} parent=1 // pred_check_branch
      %408 = sbr.rel (0) target = $region45
    $region44: #{_mlp_forward_impl.1} parent=1 // pred_region
      _
    $region45: #{_mlp_forward_impl.1} parent=1 // pred_fallthru
      _
    // Predicated region
    $region46: #{_mlp_forward_impl.1} parent=1 // pred_check
      _
    $region47: #{_mlp_forward_impl.1} parent=1 // pred_check_branch
      %410 = sbr.rel (0) target = $region49
    $region48: #{_mlp_forward_impl.1} parent=1 // pred_region
      _
    $region49: #{_mlp_forward_impl.1} parent=1 // pred_fallthru
      _
    %411 = vsyncpa [#allocation3], 1
    %412 = vsyncpa [#allocation5], 1

</llo_original>
